<compile_context>
chip_gen: v7x
topology: tpu7x:2x2x1
jax: 0.10.0
libtpu: 0.0.40
codegen_flags: <defaults>
</compile_context>

<pallas_src>
import numpy as np
import jax
import jax.numpy as jnp
from jax.experimental import pallas as pl
from jax.experimental.pallas import tpu as pltpu

BLOCKSIZE = 4096   # bitsandbytes blockwise-quantization block size
NCODES = 256       # 8-bit code table


def _bnb_matmul_kernel(x_ref, w_ref, scale_ref, bias_ref, o_ref, acc_ref):
    """One (tm, tn) output tile; reduction over K on grid axis 2.

    x_ref     : (tm, tk) bf16  activations
    w_ref     : (tk, tn) bf16  dequantized code values (weight^T tile)
    scale_ref : (1, tn)  f32   per-output-column absmax scale
    bias_ref  : (1, tn)  f32   bias
    o_ref     : (tm, tn) out dtype (activation dtype)
    acc_ref   : (tm, tn) f32   VMEM accumulator
    """
    k = pl.program_id(2)

    @pl.when(k == 0)
    def _():
        acc_ref[...] = jnp.zeros_like(acc_ref)

    # bf16 x bf16 -> f32 on the MXU; absmax/bias deferred to the finalize.
    acc_ref[...] += jnp.dot(x_ref[...], w_ref[...],
                            preferred_element_type=jnp.float32)

    @pl.when(k == pl.num_programs(2) - 1)
    def _():
        o_ref[...] = (acc_ref[...] * scale_ref[...]
                      + bias_ref[...]).astype(o_ref.dtype)


def frozen_bnb_linear(x, weight_u8, absmax, code, bias=None, *,
                      tm=256, tn=256, tk=1024):
    """Replicates FrozenBNBLinear.forward (adapter=None).

    x         : (..., in_features)           activations
    weight_u8 : (out_features, in_features)  uint8 code indices
    absmax    : (numel // 4096,)             f32 blockwise absmax
    code      : (256,)                       f32 dequantization table
    bias      : (out_features,) or None
    """
    lead = x.shape[:-1]
    K = x.shape[-1]
    N, K_w = weight_u8.shape
    assert K_w == K
    M = int(np.prod(lead)) if lead else 1
    out_dtype = x.dtype

    # ---- one-shot dequantization of the frozen weight's code values ---------
    # XLA gather outside the hot loop (weights are frozen; the reference also
    # materializes the dequantized weight).  Keeps the Pallas kernel MXU-bound.
    code_f32 = code.astype(jnp.float32)
    w_code = jnp.take(code_f32, weight_u8.astype(jnp.int32), axis=0)   # (N, K) f32

    assert (N * K) % BLOCKSIZE == 0, "bnb blockwise quantization uses 4096-elem blocks"
    if BLOCKSIZE % K == 0:
        # GPT-J layout: each 4096-element block spans whole weight rows, so the
        # scale depends only on the output row -> apply it in the finalize.
        rows_per_block = BLOCKSIZE // K
        scale_row = jnp.repeat(absmax.astype(jnp.float32), rows_per_block)   # (N,)
        w_mat = w_code
    else:
        # General layout: absmax varies along K (blocks may even cross rows),
        # so fold it into the materialized weight; unit column scale.
        scale_elem = jnp.repeat(absmax.astype(jnp.float32), BLOCKSIZE).reshape(N, K)
        w_mat = w_code * scale_elem
        scale_row = jnp.ones((N,), jnp.float32)

    w_t = w_mat.astype(jnp.bfloat16).T                   # (K, N) bf16 MXU operand
    x2 = x.reshape(M, K).astype(jnp.bfloat16)            # bf16 activations
    scale_row = scale_row.reshape(1, N)
    if bias is None:
        bias_row = jnp.zeros((1, N), jnp.float32)
    else:
        bias_row = bias.reshape(1, N).astype(jnp.float32)

    # ---- tiling --------------------------------------------------------------
    tm = min(tm, ((M + 7) // 8) * 8)                     # keep sublane multiple of 8
    tn = min(tn, N)
    tk = min(tk, K)
    # v7x shards "parallel" grid axes over its 2 TensorCores: keep the parallel
    # extent >= 2 when the problem allows it (no effect on v5e/v6e).
    if (pl.cdiv(M, tm)) * (N // max(tn, 1)) < 2:
        if tn % 256 == 0:
            tn //= 2
        elif tm % 512 == 0:
            tm //= 2
    assert N % tn == 0 and K % tk == 0, "N/K must be divisible by the chosen tiles"
    assert (tn % 128 == 0 or tn == N) and (tk % 128 == 0 or tk == K) and tm % 8 == 0, \
        "tiles must respect TPU (8,128) layout"

    # Pad the row (batch*seq) dim up to a tile multiple; sliced off afterwards.
    M_pad = ((M + tm - 1) // tm) * tm
    if M_pad != M:
        x2 = jnp.pad(x2, ((0, M_pad - M), (0, 0)))

    # VMEM budget: double-buffered inputs/outputs + f32 accumulator.  Defaults
    # (256, 256, 1024) use ~3 MiB — far below the 32 MiB scoped default and
    # v7x's 64 MiB physical VMEM.
    out_isz = jnp.dtype(out_dtype).itemsize
    vmem_bytes = (2 * tm * tk * 2          # x tiles (bf16, double buffered)
                  + 2 * tk * tn * 2        # w tiles (bf16, double buffered)
                  + 2 * tm * tn * out_isz  # out tiles (double buffered)
                  + tm * tn * 4            # accumulator scratch
                  + 4 * 2 * tn * 4)        # absmax + bias tiles
    assert vmem_bytes < 24 * 1024 * 1024, "tile sizes exceed the VMEM budget"

    grid = (M_pad // tm, N // tn, K // tk)
    cost = pl.CostEstimate(
        flops=2 * M_pad * N * K,
        transcendentals=0,
        bytes_accessed=(M_pad * K * 2 + K * N * 2 + M_pad * N * out_isz + 2 * N * 4),
    )
    out = pl.pallas_call(
        _bnb_matmul_kernel,
        out_shape=jax.ShapeDtypeStruct((M_pad, N), out_dtype),
        grid_spec=pltpu.PrefetchScalarGridSpec(
            num_scalar_prefetch=0,
            grid=grid,
            in_specs=[
                pl.BlockSpec((tm, tk), lambda i, j, k: (i, k)),   # activations
                pl.BlockSpec((tk, tn), lambda i, j, k: (k, j)),   # dequant W^T
                pl.BlockSpec((1, tn), lambda i, j, k: (0, j)),    # absmax scale
                pl.BlockSpec((1, tn), lambda i, j, k: (0, j)),    # bias
            ],
            out_specs=pl.BlockSpec((tm, tn), lambda i, j, k: (i, j)),
            scratch_shapes=[pltpu.VMEM((tm, tn), jnp.float32)],
        ),
        compiler_params=pltpu.CompilerParams(
            dimension_semantics=("parallel", "parallel", "arbitrary"),
            vmem_limit_bytes=32 * 1024 * 1024),
        cost_estimate=cost,
    )(x2, w_t, scale_row, bias_row)
    if M_pad != M:
        out = out[:M]
    return out.reshape(*lead, N)


def quantize_blockwise_synthetic(w, code):
    """Deterministic blockwise quantization (same structure as bitsandbytes):
    per 4096-element block absmax + nearest-code-index lookup."""
    flat = w.reshape(-1)
    assert flat.size % BLOCKSIZE == 0
    blocks = flat.reshape(-1, BLOCKSIZE)
    absmax = jnp.max(jnp.abs(blocks), axis=1)
    normed = blocks / absmax[:, None]
    idx = jnp.argmin(jnp.abs(normed[:, :, None] - code[None, None, :]), axis=-1)
    q_u8 = idx.reshape(w.shape).astype(jnp.uint8)
    return q_u8, absmax


# TODO(synk): backward (DequantizeAndLinear.backward) and the optional adapter
# branch are not implemented; the module default is adapter=None, forward only.

if __name__ == "__main__":
    key = jax.random.PRNGKey(0)
    kx, kw, kb = jax.random.split(key, 3)

    # Small shapes consistent with the module: (batch, seq, in_features) -> out_features.
    B, S, K, N = 2, 8, 256, 256

    # Synthetic buffers matching FrozenBNBLinear.__init__:
    #   weight (N, K) uint8 code indices, absmax (numel/4096,), code (256,), bias (N,)
    code = jnp.linspace(-1.0, 1.0, NCODES, dtype=jnp.float32)   # synthetic code table
    w_f = jax.random.normal(kw, (N, K), dtype=jnp.float32) * 0.05
    q_u8, absmax = quantize_blockwise_synthetic(w_f, code)
    bias = jax.random.normal(kb, (N,), dtype=jnp.float32) * 0.1
    x = jax.random.normal(kx, (B, S, K), dtype=jnp.float32)

    # tk=128 here only to exercise the full (i, j, k) grid (K-reduction) on toy
    # shapes; production default is tk=1024 for GPT-J's K=4096.
    out = frozen_bnb_linear(x, q_u8, absmax, code, bias, tk=128)
    out = jax.block_until_ready(out)

    # pure-JAX reference of dequantize_blockwise + F.linear
    rows_per_block = BLOCKSIZE // K
    w_deq = code[q_u8.astype(jnp.int32)] * jnp.repeat(absmax, rows_per_block)[:, None]
    ref = x @ w_deq.T + bias

    assert out.shape == (B, S, N)
    assert out.dtype == x.dtype
    if not np.allclose(np.asarray(out), np.asarray(ref), rtol=1e-2, atol=1e-2):
        raise AssertionError("Pallas output does not match reference")
    print("KERNEL_OK")
</pallas_src>

<mosaic_0001>
module attributes {stable_mosaic.version = 11 : i64} {
  func.func @_bnb_matmul_kernel(%arg0: i32, %arg1: i32, %arg2: i32, %arg3: memref<16x128xbf16, #tpu.memory_space<vmem>>, %arg4: memref<128x128xbf16, #tpu.memory_space<vmem>>, %arg5: memref<1x128xf32, #tpu.memory_space<vmem>>, %arg6: memref<1x128xf32, #tpu.memory_space<vmem>>, %arg7: memref<16x128xf32, #tpu.memory_space<vmem>>, %arg8: memref<16x128xf32, #tpu.memory_space<vmem>>) attributes {dimension_semantics = [#tpu.dimension_semantics<parallel>, #tpu.dimension_semantics<parallel>, #tpu.dimension_semantics<arbitrary>], iteration_bounds = array<i64: 1, 2, 2>, scalar_prefetch = 0 : i64, scratch_operands = 1 : i64, tpu.core_type = #tpu.core_type<tc>, window_params = [{transform_indices = @transform_0, window_bounds = array<i64: 16, 128>}, {transform_indices = @transform_1, window_bounds = array<i64: 128, 128>}, {transform_indices = @transform_2, window_bounds = array<i64: 1, 128>}, {transform_indices = @transform_3, window_bounds = array<i64: 1, 128>}, {transform_indices = @transform_4, window_bounds = array<i64: 16, 128>}]} {
    %c0_i32 = arith.constant 0 : i32
    %0 = arith.cmpi eq, %arg2, %c0_i32 : i32
    %1 = arith.extui %0 : i1 to i32
    %c0_i32_0 = arith.constant 0 : i32
    %2 = arith.cmpi ne, %1, %c0_i32_0 : i32
    scf.if %2 {
      %cst_9 = arith.constant 0.000000e+00 : f32
      %12 = vector.broadcast %cst_9 : f32 to vector<16x128xf32>
      %c0_10 = arith.constant 0 : index
      %c0_11 = arith.constant 0 : index
      %13 = vector.load %arg8[%c0_10, %c0_11] : memref<16x128xf32, #tpu.memory_space<vmem>>, vector<16x128xf32>
      tpu.vector_store %arg8[%c0_10, %c0_11], %12 {strides = array<i32>} : memref<16x128xf32, #tpu.memory_space<vmem>>, vector<16x128xf32>,
    } else {
    }
    %c0 = arith.constant 0 : index
    %c0_1 = arith.constant 0 : index
    %3 = vector.load %arg8[%c0, %c0_1] : memref<16x128xf32, #tpu.memory_space<vmem>>, vector<16x128xf32>
    %c0_2 = arith.constant 0 : index
    %c0_3 = arith.constant 0 : index
    %4 = vector.load %arg3[%c0_2, %c0_3] : memref<16x128xbf16, #tpu.memory_space<vmem>>, vector<16x128xbf16>
    %c0_4 = arith.constant 0 : index
    %c0_5 = arith.constant 0 : index
    %5 = vector.load %arg4[%c0_4, %c0_5] : memref<128x128xbf16, #tpu.memory_space<vmem>>, vector<128x128xbf16>
    %cst = arith.constant dense<0.000000e+00> : vector<16x128xf32>
    %6 = tpu.matmul %4, %5, %cst {dimension_numbers = #tpu.dot_dimension_numbers<[1], [0], [0], [1], [0, 0, 1, 1], [], []>} : vector<16x128xbf16>, vector<128x128xbf16>, vector<16x128xf32> -> vector<16x128xf32>
    %7 = arith.addf %3, %6 : vector<16x128xf32>
    %c0_6 = arith.constant 0 : index
    %c0_7 = arith.constant 0 : index
    %8 = vector.load %arg8[%c0_6, %c0_7] : memref<16x128xf32, #tpu.memory_space<vmem>>, vector<16x128xf32>
    tpu.vector_store %arg8[%c0_6, %c0_7], %7 {strides = array<i32>} : memref<16x128xf32, #tpu.memory_space<vmem>>, vector<16x128xf32>,
    %c1_i32 = arith.constant 1 : i32
    %9 = arith.cmpi eq, %arg2, %c1_i32 : i32
    %10 = arith.extui %9 : i1 to i32
    %c0_i32_8 = arith.constant 0 : i32
    %11 = arith.cmpi ne, %10, %c0_i32_8 : i32
    scf.if %11 {
      %c0_9 = arith.constant 0 : index
      %c0_10 = arith.constant 0 : index
      %12 = vector.load %arg8[%c0_9, %c0_10] : memref<16x128xf32, #tpu.memory_space<vmem>>, vector<16x128xf32>
      %c0_11 = arith.constant 0 : index
      %c0_12 = arith.constant 0 : index
      %13 = vector.load %arg5[%c0_11, %c0_12] : memref<1x128xf32, #tpu.memory_space<vmem>>, vector<1x128xf32>
      %14 = vector.broadcast %13 : vector<1x128xf32> to vector<16x128xf32>
      %15 = arith.mulf %12, %14 : vector<16x128xf32>
      %c0_13 = arith.constant 0 : index
      %c0_14 = arith.constant 0 : index
      %16 = vector.load %arg6[%c0_13, %c0_14] : memref<1x128xf32, #tpu.memory_space<vmem>>, vector<1x128xf32>
      %17 = vector.broadcast %16 : vector<1x128xf32> to vector<16x128xf32>
      %18 = arith.addf %15, %17 : vector<16x128xf32>
      %c0_15 = arith.constant 0 : index
      %c0_16 = arith.constant 0 : index
      %19 = vector.load %arg7[%c0_15, %c0_16] : memref<16x128xf32, #tpu.memory_space<vmem>>, vector<16x128xf32>
      tpu.vector_store %arg7[%c0_15, %c0_16], %18 {strides = array<i32>} : memref<16x128xf32, #tpu.memory_space<vmem>>, vector<16x128xf32>,
    } else {
    }
    return
  }
  func.func @transform_0(%arg0: i32, %arg1: i32, %arg2: i32) -> (i32, i32) {
    %c0_i32 = arith.constant 0 : i32
    return %arg0, %arg2 : i32, i32
  }
  func.func @transform_1(%arg0: i32, %arg1: i32, %arg2: i32) -> (i32, i32) {
    %c0_i32 = arith.constant 0 : i32
    return %arg2, %arg1 : i32, i32
  }
  func.func @transform_2(%arg0: i32, %arg1: i32, %arg2: i32) -> (i32, i32) {
    %c0_i32 = arith.constant 0 : i32
    %c0_i32_0 = arith.constant 0 : i32
    return %c0_i32, %arg1 : i32, i32
  }
  func.func @transform_3(%arg0: i32, %arg1: i32, %arg2: i32) -> (i32, i32) {
    %c0_i32 = arith.constant 0 : i32
    %c0_i32_0 = arith.constant 0 : i32
    return %c0_i32, %arg1 : i32, i32
  }
  func.func @transform_4(%arg0: i32, %arg1: i32, %arg2: i32) -> (i32, i32) {
    %c0_i32 = arith.constant 0 : i32
    return %arg0, %arg1 : i32, i32
  }
}

</mosaic_0001>

<llo_original>
// kernel: tpu_custom_call.1
$region0: #{tpu_custom_call.1}
  #allocation0 [shape = 'u32[]', space=smem, size = 0x4, offset = 0x4, fixed_abs, tag = 'smem constant byte address 0x4 - core index']
  #allocation1 [shape = 'u32[144,128]{1,0:T(1,128)}', space=vmem, size = 0x12000, scoped, tag = 'internal scratch']
  #allocation2 [shape = 'f32[16,128]{1,0:T(8,128)}', space=vmem, size = 0x2000, scoped, tag = 'scratch operand']
  %s0 = inlined_call_operand.hbm [shape: bf16[16,256], index: 0, kind: input, shape index: {}]
  %s1 = inlined_call_operand.hbm [shape: bf16[256,256], index: 1, kind: input, shape index: {}]
  %s2 = inlined_call_operand.vmem [shape: f32[1,256], index: 2, kind: input, shape index: {}]
  %s3 = inlined_call_operand.vmem [shape: f32[1,256], index: 3, kind: input, shape index: {}]
  %s4 = inlined_call_operand.hbm [shape: f32[16,256], index: 4, kind: output, shape index: {}]
  %s5 = sld [smem:[#allocation0]]
  $region65: #{tpu_custom_call.1} parent=0
    _
  %s7 = ssub.s32 1, %s5
  %s8 = scalar_select 0, %s7, %s5
  $region1: #{tpu_custom_call.1} parent=0
    #allocation3 [shape = 'u8[8192]{0}', space=vmem, size = 0x2000, scoped, tag = 'input window, operand 0']
    #allocation4 [shape = 's32[2]{0}', space=sflag, size = 0x8, scoped, tag = 'scoped memory for tpu_custom_call.1']
    #allocation5 [shape = 's32[2]{0}', space=sflag, size = 0x8, scoped, tag = 'scoped memory for tpu_custom_call.1']
    #allocation6 [shape = 'u8[65536]{0}', space=vmem, size = 0x10000, scoped, tag = 'input window, operand 1']
    #allocation7 [shape = 's32[2]{0}', space=sflag, size = 0x8, scoped, tag = 'scoped memory for tpu_custom_call.1']
    #allocation8 [shape = 'u8[16384]{0}', space=vmem, size = 0x4000, scoped, tag = 'output window, operand 0']
    %9 = vsyncpa [#allocation4], 0
    %s10 = scalar_lea.sflag [#allocation4], 1
    %11 = vsyncpa %s10, 0
    %12 = vsyncpa [#allocation7], 0
    %s13 = scalar_lea.sflag [#allocation7], 1
    %14 = vsyncpa %s13, 0
    %15 = vsyncpa [#allocation5], 0
    %s16 = scalar_lea.sflag [#allocation5], 1
    %17 = vsyncpa %s16, 0
    loop: start=0, step=1, limit=6
    $region2: #{tpu_custom_call.1} parent=1 // loop_pre_header
      _
    $region3: #{tpu_custom_call.1} parent=1 // loop_header
      %s19 = sphi 0, %s23
      %p20 = scmp.ge.s32.totalorder %s19, 6
      %s26 = sphi 0, %s45
      %s27 = sphi 0, %s41
      %s28 = sphi 0, %s37
      %s29 = sphi 0, %s26
      %s30 = sphi 0, %s27
      %s31 = sphi 0, %s28
      %s32 = sphi 0, %s29
      %s33 = sphi 0, %s30
      %s34 = sphi 0, %s31
      %s50 = sphi 0, %s52
      %s53 = sphi 0, %s50
      %s54 = sphi 0, %s53
      %s70 = sphi 0, %s54
      %s78 = sphi 0, %s80
      %s81 = sphi 0, %s78
      %s82 = sphi 0, %s81
      %s98 = sphi 0, %s82
      %s104 = sphi 0, %s106
      %s107 = sphi 0, %s104
      %s108 = sphi 0, %s107
      %s124 = sphi 0, %s108
      %s130 = sphi 0, %s132
      %s133 = sphi 0, %s130
      %s134 = sphi 0, %s133
      %s150 = sphi 0, %s134
      %s158 = sphi 0, %s160
      %s161 = sphi 0, %s158
      %s162 = sphi 0, %s161
      %s178 = sphi 0, %s162
    $region4: #{tpu_custom_call.1} parent=1 // loop_header_branch
      %22 = sbr.rel (%p20) target = $region8
    $region5: #{tpu_custom_call.1} parent=1 // loop_body
      %s24 = ssub.s32 %s19, 1
      %s25 = ssub.s32 %s19, 2
      %s35 = sadd.s32 1, %s28
      %p36 = scmp.ge.s32.totalorder %s35, 2
      %s37 = scalar_select %p36, 0, %s35
      %s38 = sadd.s32 1, %s27
      %s39 = scalar_select %p36, %s38, %s27
      %p40 = scmp.ge.s32.totalorder %s39, 2
      %s41 = scalar_select %p40, 0, %s39
      %s42 = sadd.s32 1, %s26
      %s43 = scalar_select %p40, %s42, %s26
      %p44 = scmp.ge.s32.totalorder %s43, 1
      %s45 = scalar_select %p44, 0, %s43
      %s46 = ssub.s32 %s26, %s45
      %s47 = ssub.s32 %s28, %s37
      %s48 = sor.u32 %s46, %s47
      %p49 = scmp.eq.s32.totalorder %s48, 0
      %s51 = sadd.s32 %s50, 1
      %s52 = scalar_select %p49, %s50, %s51
      %p55 = pneg %p49
      %p56 = scmp.eq.s32.totalorder %s19, 3
      %p57 = por %p55, %p56
      %p58 = scmp.ne.s32.totalorder %s50, %s53
      %p59 = scmp.eq.s32.totalorder %s19, 0
      %p60 = por %p58, %p59
      %p61 = scmp.ne.s32.totalorder %s50, %s53
      %p62 = scmp.eq.s32.totalorder %s24, 3
      %p63 = por %p61, %p62
      %p64 = scmp.ne.s32.totalorder %s53, %s54
      %p65 = scmp.eq.s32.totalorder %s24, 0
      %p66 = por %p64, %p65
      %p67 = scmp.ne.s32.totalorder %s53, %s54
      %p68 = scmp.eq.s32.totalorder %s25, 3
      %p69 = por %p67, %p68
      %p71 = scmp.ne.s32.totalorder %s54, %s70
      %p72 = scmp.eq.s32.totalorder %s25, 0
      %p73 = por %p71, %p72
      %s74 = ssub.s32 %s28, %s37
      %s75 = ssub.s32 %s27, %s41
      %s76 = sor.u32 %s74, %s75
      %p77 = scmp.eq.s32.totalorder %s76, 0
      %s79 = sadd.s32 %s78, 1
      %s80 = scalar_select %p77, %s78, %s79
      %p83 = pneg %p77
      %p84 = scmp.eq.s32.totalorder %s19, 3
      %p85 = por %p83, %p84
      %p86 = scmp.ne.s32.totalorder %s78, %s81
      %p87 = scmp.eq.s32.totalorder %s19, 0
      %p88 = por %p86, %p87
      %p89 = scmp.ne.s32.totalorder %s78, %s81
      %p90 = scmp.eq.s32.totalorder %s24, 3
      %p91 = por %p89, %p90
      %p92 = scmp.ne.s32.totalorder %s81, %s82
      %p93 = scmp.eq.s32.totalorder %s24, 0
      %p94 = por %p92, %p93
      %p95 = scmp.ne.s32.totalorder %s81, %s82
      %p96 = scmp.eq.s32.totalorder %s25, 3
      %p97 = por %p95, %p96
      %p99 = scmp.ne.s32.totalorder %s82, %s98
      %p100 = scmp.eq.s32.totalorder %s25, 0
      %p101 = por %p99, %p100
      %s102 = ssub.s32 %s27, %s41
      %p103 = scmp.eq.s32.totalorder %s102, 0
      %s105 = sadd.s32 %s104, 1
      %s106 = scalar_select %p103, %s104, %s105
      %p109 = pneg %p103
      %p110 = scmp.eq.s32.totalorder %s19, 3
      %p111 = por %p109, %p110
      %p112 = scmp.ne.s32.totalorder %s104, %s107
      %p113 = scmp.eq.s32.totalorder %s19, 0
      %p114 = por %p112, %p113
      %p115 = scmp.ne.s32.totalorder %s104, %s107
      %p116 = scmp.eq.s32.totalorder %s24, 3
      %p117 = por %p115, %p116
      %p118 = scmp.ne.s32.totalorder %s107, %s108
      %p119 = scmp.eq.s32.totalorder %s24, 0
      %p120 = por %p118, %p119
      %p121 = scmp.ne.s32.totalorder %s107, %s108
      %p122 = scmp.eq.s32.totalorder %s25, 3
      %p123 = por %p121, %p122
      %p125 = scmp.ne.s32.totalorder %s108, %s124
      %p126 = scmp.eq.s32.totalorder %s25, 0
      %p127 = por %p125, %p126
      %s128 = ssub.s32 %s27, %s41
      %p129 = scmp.eq.s32.totalorder %s128, 0
      %s131 = sadd.s32 %s130, 1
      %s132 = scalar_select %p129, %s130, %s131
      %p135 = pneg %p129
      %p136 = scmp.eq.s32.totalorder %s19, 3
      %p137 = por %p135, %p136
      %p138 = scmp.ne.s32.totalorder %s130, %s133
      %p139 = scmp.eq.s32.totalorder %s19, 0
      %p140 = por %p138, %p139
      %p141 = scmp.ne.s32.totalorder %s130, %s133
      %p142 = scmp.eq.s32.totalorder %s24, 3
      %p143 = por %p141, %p142
      %p144 = scmp.ne.s32.totalorder %s133, %s134
      %p145 = scmp.eq.s32.totalorder %s24, 0
      %p146 = por %p144, %p145
      %p147 = scmp.ne.s32.totalorder %s133, %s134
      %p148 = scmp.eq.s32.totalorder %s25, 3
      %p149 = por %p147, %p148
      %p151 = scmp.ne.s32.totalorder %s134, %s150
      %p152 = scmp.eq.s32.totalorder %s25, 0
      %p153 = por %p151, %p152
      %s154 = ssub.s32 %s26, %s45
      %s155 = ssub.s32 %s27, %s41
      %s156 = sor.u32 %s154, %s155
      %p157 = scmp.eq.s32.totalorder %s156, 0
      %s159 = sadd.s32 %s158, 1
      %s160 = scalar_select %p157, %s158, %s159
      %p163 = pneg %p157
      %p164 = scmp.eq.s32.totalorder %s19, 3
      %p165 = por %p163, %p164
      %p166 = scmp.ne.s32.totalorder %s158, %s161
      %p167 = scmp.eq.s32.totalorder %s19, 0
      %p168 = por %p166, %p167
      %p169 = scmp.ne.s32.totalorder %s158, %s161
      %p170 = scmp.eq.s32.totalorder %s24, 3
      %p171 = por %p169, %p170
      %p172 = scmp.ne.s32.totalorder %s161, %s162
      %p173 = scmp.eq.s32.totalorder %s24, 0
      %p174 = por %p172, %p173
      %p175 = scmp.ne.s32.totalorder %s161, %s162
      %p176 = scmp.eq.s32.totalorder %s25, 3
      %p177 = por %p175, %p176
      %p179 = scmp.ne.s32.totalorder %s162, %s178
      %p180 = scmp.eq.s32.totalorder %s25, 0
      %p181 = por %p179, %p180
      %p182 = scmp.le.s32.totalorder 1, %s19
      %p183 = scmp.lt.s32.totalorder %s19, 5
      %p184 = pnand %p182, %p183
      %p185 = pneg %p184
      // Predicated region
      $region9: #{tpu_custom_call.1} parent=5 // pred_check
        _
      $region10: #{tpu_custom_call.1} parent=5 // pred_check_branch
        %187 = sbr.rel (%p184) target = $region12
      $region11: #{tpu_custom_call.1} parent=5 // pred_region
        %s188 = ssub.s32 %s19, 1
      $region12: #{tpu_custom_call.1} parent=5 // pred_fallthru
        _
      %p189 = scmp.lt.s32.totalorder %s19, 4
      // Predicated region
      $region13: #{tpu_custom_call.1} parent=5 // pred_check
        %p190 = pneg %p189
      $region14: #{tpu_custom_call.1} parent=5 // pred_check_branch
        %192 = sbr.rel (%p190) target = $region16
      $region15: #{tpu_custom_call.1} parent=5 // pred_region
        // Predicated region
        $region17: #{tpu_custom_call.1} parent=15 // pred_check
          %p193 = pneg %p60
        $region18: #{tpu_custom_call.1} parent=15 // pred_check_branch
          %195 = sbr.rel (%p193) target = $region20
        $region19: #{tpu_custom_call.1} parent=15 // pred_region
          %s196 = sand.u32 %s50, 1
          %s197 = scalar_lea.sflag [#allocation4], %s196
          %s198 = sand.u32 %s50, 1
          %s199 = smul.addr %s198, 8
          %s200 = scalar_lea.vmem [#allocation3], %s199
          %s201 = smul.u32 2, %s26
          %s203 = ssub.s32 128, 128
          %204 = vsyncadd %s197, %s203
          %s205 = smul.addr %s201, 2
          %s206 = sadd.s32 %s28, %s205
          %s207 = smul.addr %s206, 64
          %s208 = scalar_lea.hbm %s0, %s207
          %s209 = sshll.u32 %s200, 4
          %s210 = int_to_ptr.vmem [resolvable:$true] %s209
          %215 = dma.hbm_to_vmem [thread:$0]  %s208, 128, %s210, %s197, 128, 64, 4
        $region20: #{tpu_custom_call.1} parent=15 // pred_fallthru
          _
        // Predicated region
        $region21: #{tpu_custom_call.1} parent=15 // pred_check
          %p216 = pneg %p88
        $region22: #{tpu_custom_call.1} parent=15 // pred_check_branch
          %218 = sbr.rel (%p216) target = $region24
        $region23: #{tpu_custom_call.1} parent=15 // pred_region
          %s219 = sand.u32 %s78, 1
          %s220 = scalar_lea.sflag [#allocation7], %s219
          %s221 = sand.u32 %s78, 1
          %s222 = smul.addr %s221, 64
          %s223 = scalar_lea.vmem [#allocation6], %s222
          %s224 = smul.u32 16, %s28
          %s226 = ssub.s32 1024, 1024
          %227 = vsyncadd %s220, %s226
          %s228 = smul.addr %s224, 2
          %s229 = sadd.s32 %s27, %s228
          %s230 = smul.addr %s229, 64
          %s231 = scalar_lea.hbm %s1, %s230
          %s232 = sshll.u32 %s223, 4
          %s233 = int_to_ptr.vmem [resolvable:$true] %s232
          %238 = dma.hbm_to_vmem [thread:$0]  %s231, 1024, %s233, %s220, 128, 64, 4
        $region24: #{tpu_custom_call.1} parent=15 // pred_fallthru
          _
        // Predicated region
        $region25: #{tpu_custom_call.1} parent=15 // pred_check
          %p239 = pneg %p114
        $region26: #{tpu_custom_call.1} parent=15 // pred_check_branch
          %241 = sbr.rel (%p239) target = $region28
        $region27: #{tpu_custom_call.1} parent=15 // pred_region
          %p242 = scmp.lt.s32.totalorder %s27, 1
          %s243 = scalar_select %p242, %s27, 1
          %s244 = scalar_lea.vmem %s2, %s243
        $region28: #{tpu_custom_call.1} parent=15 // pred_fallthru
          _
        // Predicated region
        $region29: #{tpu_custom_call.1} parent=15 // pred_check
          %p245 = pneg %p140
        $region30: #{tpu_custom_call.1} parent=15 // pred_check_branch
          %247 = sbr.rel (%p245) target = $region32
        $region31: #{tpu_custom_call.1} parent=15 // pred_region
          %p248 = scmp.lt.s32.totalorder %s27, 1
          %s249 = scalar_select %p248, %s27, 1
          %s250 = scalar_lea.vmem %s3, %s249
        $region32: #{tpu_custom_call.1} parent=15 // pred_fallthru
          _
      $region16: #{tpu_custom_call.1} parent=5 // pred_fallthru
        _
      %p251 = scmp.le.s32.totalorder 1, %s19
      %p252 = scmp.lt.s32.totalorder %s19, 5
      %p253 = pnand %p251, %p252
      %p254 = pneg %p253
      // Predicated region
      $region33: #{tpu_custom_call.1} parent=5 // pred_check
        _
      $region34: #{tpu_custom_call.1} parent=5 // pred_check_branch
        %256 = sbr.rel (%p253) target = $region36
      $region35: #{tpu_custom_call.1} parent=5 // pred_region
        %s257 = ssub.s32 %s19, 1
        %s258 = sand.u32 %s53, 1
        %s259 = scalar_lea.sflag [#allocation4], %s258
        %s260 = sand.u32 %s53, 1
        %s261 = smul.addr %s260, 8
        %s262 = scalar_lea.vmem [#allocation3], %s261
        // Predicated region
        $region37: #{tpu_custom_call.1} parent=35 // pred_check
          %p263 = pneg %p66
        $region38: #{tpu_custom_call.1} parent=35 // pred_check_branch
          %265 = sbr.rel (%p263) target = $region40
        $region39: #{tpu_custom_call.1} parent=35 // pred_region
          %266 = dma.done %s259, 128
        $region40: #{tpu_custom_call.1} parent=35 // pred_fallthru
          _
        %s267 = sand.u32 %s81, 1
        %s268 = scalar_lea.sflag [#allocation7], %s267
        %s269 = sand.u32 %s81, 1
        %s270 = smul.addr %s269, 64
        %s271 = scalar_lea.vmem [#allocation6], %s270
        // Predicated region
        $region41: #{tpu_custom_call.1} parent=35 // pred_check
          %p272 = pneg %p94
        $region42: #{tpu_custom_call.1} parent=35 // pred_check_branch
          %274 = sbr.rel (%p272) target = $region44
        $region43: #{tpu_custom_call.1} parent=35 // pred_region
          %275 = dma.done %s268, 1024
        $region44: #{tpu_custom_call.1} parent=35 // pred_fallthru
          _
        %s276 = sand.u32 %s53, 1
        %s277 = scalar_lea.sflag [#allocation4], %s276
        %s278 = sand.u32 %s53, 1
        %s279 = smul.addr %s278, 8
        %s280 = scalar_lea.vmem [#allocation3], %s279
        %p281 = pneg %p66
        %p282 = pneg %p63
        %s283 = sand.u32 %s81, 1
        %s284 = scalar_lea.sflag [#allocation7], %s283
        %s285 = sand.u32 %s81, 1
        %s286 = smul.addr %s285, 64
        %s287 = scalar_lea.vmem [#allocation6], %s286
        %p288 = pneg %p94
        %p289 = pneg %p91
        %p290 = scmp.lt.s32.totalorder %s30, 1
        %s291 = scalar_select %p290, %s30, 1
        %s292 = scalar_lea.vmem %s2, %s291
        %p293 = pneg %p120
        %p294 = pneg %p117
        %p295 = scmp.lt.s32.totalorder %s30, 1
        %s296 = scalar_select %p295, %s30, 1
        %s297 = scalar_lea.vmem %s3, %s296
        %p298 = pneg %p146
        %p299 = pneg %p143
        %p300 = pneg %p174
        %p301 = pneg %p171
        %s302 = sand.u32 %s161, 1
        %s303 = scalar_lea.sflag [#allocation5], %s302
        %s304 = sand.u32 %s161, 1
        %s305 = smul.addr %s304, 16
        %s306 = scalar_lea.vmem [#allocation8], %s305
        %s307 = smul.u32 2, %s29
        %s308 = smul.u32 16, %s31
        %p309 = scmp.lt.s32.totalorder %s30, 1
        %s310 = scalar_select %p309, %s30, 1
        %s311 = scalar_lea.vmem %s2, %s310
        %p312 = scmp.lt.s32.totalorder %s30, 1
        %s313 = scalar_select %p312, %s30, 1
        %s314 = scalar_lea.vmem %s3, %s313
        %s315 = smul.u32 2, %s29
        %p317 = scmp.eq.s32.totalorder %s31, 0
        // Predicated region
        $region45: #{tpu_custom_call.1} parent=35 // pred_check
          %p318 = pneg %p317
        $region46: #{tpu_custom_call.1} parent=35 // pred_check_branch
          %320 = sbr.rel (%p318) target = $region48
        $region47: #{tpu_custom_call.1} parent=35 // pred_region
          %321 = vst [vmem:[#allocation2] sm:$0xff] 0.0
          %322 = vst [vmem:[#allocation2 + $0x8] sm:$0xff] 0.0
        $region48: #{tpu_custom_call.1} parent=35 // pred_fallthru
          _
        %v323 = vld [vmem:[#allocation2] sm:$0xff]
        %v324 = vld [vmem:[#allocation2 + $0x8] sm:$0xff]
        %v325 = vld [vmem:[%s262] sm:$0xf]
        %v326 = vld [vmem:[%s262 + $0x4] sm:$0xf]
        %v327 = vld [vmem:[%s271] sm:$0xf]
        %v328 = vld [vmem:[%s271 + $0x4] sm:$0xf]
        %v329 = vld [vmem:[%s271 + $0x8] sm:$0xf]
        %v330 = vld [vmem:[%s271 + $0xc] sm:$0xf]
        %v331 = vld [vmem:[%s271 + $0x10] sm:$0xf]
        %v332 = vld [vmem:[%s271 + $0x14] sm:$0xf]
        %v333 = vld [vmem:[%s271 + $0x18] sm:$0xf]
        %v334 = vld [vmem:[%s271 + $0x1c] sm:$0xf]
        %v335 = vld [vmem:[%s271 + $0x20] sm:$0xf]
        %v336 = vld [vmem:[%s271 + $0x24] sm:$0xf]
        %v337 = vld [vmem:[%s271 + $0x28] sm:$0xf]
        %v338 = vld [vmem:[%s271 + $0x2c] sm:$0xf]
        %v339 = vld [vmem:[%s271 + $0x30] sm:$0xf]
        %v340 = vld [vmem:[%s271 + $0x34] sm:$0xf]
        %v341 = vld [vmem:[%s271 + $0x38] sm:$0xf]
        %v342 = vld [vmem:[%s271 + $0x3c] sm:$0xf]
        %v345 = vunpack.c.l.b16 %v325
        %v346 = vunpack.c.l.b16 %v326
        %v347 = vpack.c.b16 %v346, %v345
        %v365 = vunpack.c.l.b16 %v327
        %v366 = vunpack.c.l.b16 %v328
        %v367 = vunpack.c.l.b16 %v329
        %v368 = vunpack.c.l.b16 %v330
        %v369 = vunpack.c.l.b16 %v331
        %v370 = vunpack.c.l.b16 %v332
        %v371 = vunpack.c.l.b16 %v333
        %v372 = vunpack.c.l.b16 %v334
        %v373 = vunpack.c.l.b16 %v335
        %v374 = vunpack.c.l.b16 %v336
        %v375 = vunpack.c.l.b16 %v337
        %v376 = vunpack.c.l.b16 %v338
        %v377 = vunpack.c.l.b16 %v339
        %v378 = vunpack.c.l.b16 %v340
        %v379 = vunpack.c.l.b16 %v341
        %v380 = vunpack.c.l.b16 %v342
        %v381 = vpack.c.b16 %v366, %v365
        %v382 = vpack.c.b16 %v368, %v367
        %v383 = vpack.c.b16 %v370, %v369
        %v384 = vpack.c.b16 %v372, %v371
        %v385 = vpack.c.b16 %v374, %v373
        %v386 = vpack.c.b16 %v376, %v375
        %v387 = vpack.c.b16 %v378, %v377
        %v388 = vpack.c.b16 %v380, %v379
        %397 = vmatprep.subr.bf16.mxu0 0
        %398 = vmatpush1.bf16.msra.mxu0 %v381
        %399 = vmatprep.subr.bf16.mxu0 0
        %400 = vmatpush1.bf16.msra.mxu0 %v382
        %401 = vmatprep.subr.bf16.mxu0 0
        %402 = vmatpush1.bf16.msra.mxu0 %v383
        %403 = vmatprep.subr.bf16.mxu0 0
        %404 = vmatpush1.bf16.msra.mxu0 %v384
        %405 = vmatprep.subr.bf16.mxu0 0
        %406 = vmatpush1.bf16.msra.mxu0 %v385
        %407 = vmatprep.subr.bf16.mxu0 0
        %408 = vmatpush1.bf16.msra.mxu0 %v386
        %409 = vmatprep.subr.bf16.mxu0 0
        %410 = vmatpush1.bf16.msra.mxu0 %v387
        %411 = vmatprep.subr.bf16.mxu0 0
        %412 = vmatpush1.bf16.msra.mxu0 %v388
        %413 = vmatprep.subr.bf16.mxu0 0
        %414 = vmatpush1.bf16.msra.mxu0 0
        %415 = vmatprep.subr.bf16.mxu0 0
        %416 = vmatpush1.bf16.msra.mxu0 0
        %417 = vmatprep.subr.bf16.mxu0 0
        %418 = vmatpush1.bf16.msra.mxu0 0
        %419 = vmatprep.subr.bf16.mxu0 0
        %420 = vmatpush1.bf16.msra.mxu0 0
        %421 = vmatprep.subr.bf16.mxu0 0
        %422 = vmatpush1.bf16.msra.mxu0 0
        %423 = vmatprep.subr.bf16.mxu0 0
        %424 = vmatpush1.bf16.msra.mxu0 0
        %425 = vmatprep.subr.bf16.mxu0 0
        %426 = vmatpush1.bf16.msra.mxu0 0
        %427 = vmatprep.subr.bf16.mxu0 0
        %428 = vmatpush1.bf16.msra.mxu0 0
        %429 = vmatprep.mubr.bf16.mxu0 0
        %430 = vmatmul.mubr.bf16.gmra.mrb[0].mxu0 %v347
        %v431 = vpop.f32.mrb[0].mxu0
        %v432 = vadd.f32 0.0, %v431
        %v433 = vpop.f32.mrb[0].mxu0
        %v434 = vpop.f32.mrb[0].mxu0
        %v435 = vadd.f32 0.0, %v434
        %v436 = vpop.f32.mrb[0].mxu0
        %437 = vdwg.mxu0
        %v438 = vadd.f32 %v323, %v432
        %v439 = vadd.f32 %v324, %v435
        %440 = vst [vmem:[#allocation2] sm:$0xff] %v438
        %441 = vst [vmem:[#allocation2 + $0x8] sm:$0xff] %v439
        %p442 = scmp.eq.s32.totalorder %s31, 1
        // Predicated region
        $region49: #{tpu_custom_call.1} parent=35 // pred_check
          %p443 = pneg %p442
        $region50: #{tpu_custom_call.1} parent=35 // pred_check_branch
          %445 = sbr.rel (%p443) target = $region52
        $region51: #{tpu_custom_call.1} parent=35 // pred_region
          %v446 = vld [vmem:[#allocation2] sm:$0xff]
          %v447 = vld [vmem:[#allocation2 + $0x8] sm:$0xff]
          %v448 = vld [vmem:[%s311] sm:$0x1]
          %v450 = vlaneseq
          %v451 = vshrl.u32 %v450, 7
          %v452 = vsub.s32 0, %v451
          %v453 = vrot.slane %v448, %v452
          %v455 = vmul.f32 %v446, %v453
          %v456 = vmul.f32 %v447, %v453
          %v457 = vld [vmem:[%s314] sm:$0x1]
          %v459 = vlaneseq
          %v460 = vshrl.u32 %v459, 7
          %v461 = vsub.s32 0, %v460
          %v462 = vrot.slane %v457, %v461
          %v464 = vadd.f32 %v455, %v462
          %v465 = vadd.f32 %v456, %v462
          %466 = vst [vmem:[%s306] sm:$0xff] %v464
          %467 = vst [vmem:[%s306 + $0x8] sm:$0xff] %v465
        $region52: #{tpu_custom_call.1} parent=35 // pred_fallthru
          _
        %s468 = sand.u32 %s161, 1
        %s469 = scalar_lea.sflag [#allocation5], %s468
        %s470 = sand.u32 %s161, 1
        %s471 = smul.addr %s470, 16
        %s472 = scalar_lea.vmem [#allocation8], %s471
        // Predicated region
        $region53: #{tpu_custom_call.1} parent=35 // pred_check
          %p473 = pneg %p171
        $region54: #{tpu_custom_call.1} parent=35 // pred_check_branch
          %475 = sbr.rel (%p473) target = $region56
        $region55: #{tpu_custom_call.1} parent=35 // pred_region
          %s476 = smul.u32 2, %s29
          %s478 = ssub.s32 256, 256
          %479 = vsyncadd %s469, %s478
          %s480 = smul.addr %s476, 2
          %s481 = sadd.s32 %s30, %s480
          %s482 = smul.addr %s481, 128
          %s483 = scalar_lea.hbm %s4, %s482
          %s484 = sshll.u32 %s472, 4
          %s485 = int_to_ptr.vmem [resolvable:$true] %s484
          %490 = dma.vmem_to_hbm [thread:$0]  %s485, 256, %s483, %s469, 128, 256, 8
        $region56: #{tpu_custom_call.1} parent=35 // pred_fallthru
          _
      $region36: #{tpu_custom_call.1} parent=5 // pred_fallthru
        _
      %p491 = scmp.le.s32.totalorder 2, %s19
      // Predicated region
      $region57: #{tpu_custom_call.1} parent=5 // pred_check
        %p492 = pneg %p491
      $region58: #{tpu_custom_call.1} parent=5 // pred_check_branch
        %494 = sbr.rel (%p492) target = $region60
      $region59: #{tpu_custom_call.1} parent=5 // pred_region
        %s495 = ssub.s32 %s19, 2
        // Predicated region
        $region61: #{tpu_custom_call.1} parent=59 // pred_check
          %p496 = pneg %p177
        $region62: #{tpu_custom_call.1} parent=59 // pred_check_branch
          %498 = sbr.rel (%p496) target = $region64
        $region63: #{tpu_custom_call.1} parent=59 // pred_region
          %s499 = sand.u32 %s162, 1
          %s500 = scalar_lea.sflag [#allocation5], %s499
          %s501 = sand.u32 %s162, 1
          %s502 = smul.addr %s501, 16
          %s503 = scalar_lea.vmem [#allocation8], %s502
          %504 = dma.done %s500, 256
        $region64: #{tpu_custom_call.1} parent=59 // pred_fallthru
          _
      $region60: #{tpu_custom_call.1} parent=5 // pred_fallthru
        _
    $region6: #{tpu_custom_call.1} parent=1 // loop_footer
      %s23 = sadd.s32 1, %s19
    $region7: #{tpu_custom_call.1} parent=1 // loop_footer_branch
      %18 = sbr.rel target = $region3
    $region8: #{tpu_custom_call.1} parent=1 // loop_exit
      _
    %505 = vsyncpa [#allocation4], 1
    %s506 = scalar_lea.sflag [#allocation4], 1
    %507 = vsyncpa %s506, 1
    %508 = vsyncpa [#allocation7], 1
    %s509 = scalar_lea.sflag [#allocation7], 1
    %510 = vsyncpa %s509, 1
    %511 = vsyncpa [#allocation5], 1
    %s512 = scalar_lea.sflag [#allocation5], 1
    %513 = vsyncpa %s512, 1

</llo_original>
